<compile_context>
chip_gen: v5e
topology: v5e:2x2
jax: 0.10.0
libtpu: 0.0.40
codegen_flags: <defaults>
</compile_context>

<pallas_src>
import functools

import jax
import jax.numpy as jnp
from jax import lax
from jax.experimental import pallas as pl
from jax.experimental.pallas import tpu as pltpu

BLOCK_SIZE = 16   # max sequence length (causal mask buffer size in torch code)
N_EMBD = 32       # C
HEAD_SIZE = 16    # head_size
DROPOUT = 0.2     # unused (eval mode)
LANE = 128        # TPU lane width; q/k/v slabs are padded to this


def head_kernel(x_ref, wqkv_ref, o_ref):
    """One grid step = one batch element.

    x_ref:    (1, T, C)  VMEM
    wqkv_ref: (C, 3*P)   VMEM, slabs ordered [q | k | v], each padded to P lanes
    o_ref:    (1, T, P)  VMEM (only the first HEAD_SIZE columns are meaningful)
    """
    x = x_ref[0]                                      # (T, C) f32
    T, C = x.shape
    P = o_ref.shape[-1]                               # padded slab width (128)

    # Fused projection: one MXU matmul for q, k, v.  The slices below are
    # 128-lane aligned, so no cross-lane relayout is generated.
    qkv = jnp.dot(x, wqkv_ref[...], preferred_element_type=jnp.float32)   # (T, 3P)
    q = qkv[:, :P]
    k = qkv[:, P:2 * P]
    v = qkv[:, 2 * P:]

    # Attention scores, scaled by C**-0.5 (nanoGPT scales by n_embd, NOT by
    # head_size — kept to match the reference module).  Padded columns of
    # q/k are zero so they contribute nothing to the contraction.
    wei = lax.dot_general(
        q, k,
        dimension_numbers=(((1,), (1,)), ((), ())),   # contract the P axis; no explicit k.T
        preferred_element_type=jnp.float32,
    ) * (C ** -0.5)                                   # (T, T)

    # Causal mask.
    row = lax.broadcasted_iota(jnp.int32, (T, T), 0)
    col = lax.broadcasted_iota(jnp.int32, (T, T), 1)
    wei = jnp.where(col <= row, wei, -jnp.inf)

    # Numerically stable row softmax.  Divide via EUP approx reciprocal plus
    # one Newton step (keeps ~f32 accuracy while staying off the VALU chain).
    wei = jnp.exp(wei - jnp.max(wei, axis=-1, keepdims=True))
    s = jnp.sum(wei, axis=-1, keepdims=True)
    r = pl.reciprocal(s, approx=True)
    r = r * (2.0 - s * r)
    wei = wei * r

    # Dropout = identity (eval mode).
    # TODO(synk): training-mode dropout via pltpu.prng_seed / prng_random_bits.

    # Weighted aggregation of values — lane-dense (P=128) unmasked store.
    o_ref[0] = jnp.dot(wei, v, preferred_element_type=jnp.float32).astype(o_ref.dtype)


def build_fused_qkv_weight(w_key, w_query, w_value, lane=LANE):
    """Fuse the three bias-free Linears (PyTorch (H, C) layout) into one
    (C, 3*P) matrix, slab order [q | k | v], each slab zero-padded to P lanes.

    Call this ONCE — it is hoisted out of the per-forward path."""
    H, C = w_key.shape
    P = ((H + lane - 1) // lane) * lane
    def slab(w):
        return jnp.zeros((C, P), w.dtype).at[:, :H].set(w.T)
    return jnp.concatenate([slab(w_query), slab(w_key), slab(w_value)], axis=1)


@functools.partial(jax.jit, static_argnames=("head_size",))
def head_forward(x, wqkv_pad, *, head_size=HEAD_SIZE):
    """x: (B, T, C) float32.  wqkv_pad: (C, 3*P) from build_fused_qkv_weight."""
    B, T, C = x.shape
    P = wqkv_pad.shape[1] // 3

    out_pad = pl.pallas_call(
        head_kernel,
        out_shape=jax.ShapeDtypeStruct((B, T, P), x.dtype),
        grid_spec=pl.GridSpec(
            grid=(B,),   # one batch element per step; "parallel" -> both v7x TCs
            in_specs=[
                pl.BlockSpec((1, T, C), lambda b: (b, 0, 0)),
                pl.BlockSpec((C, 3 * P), lambda b: (0, 0)),   # resident across steps
            ],
            out_specs=pl.BlockSpec((1, T, P), lambda b: (b, 0, 0)),
        ),
        compiler_params=pltpu.CompilerParams(
            dimension_semantics=("parallel",),
        ),
    )(x, wqkv_pad)

    # Drop the zero padding lanes (cheap wrapper-side slice).
    return out_pad[:, :, :head_size]


def head_reference(x, w_key, w_query, w_value):
    """Pure-JAX reference mirroring the PyTorch forward (eval mode)."""
    B, T, C = x.shape
    k = x @ w_key.T
    q = x @ w_query.T
    v = x @ w_value.T
    wei = (q @ jnp.swapaxes(k, -2, -1)) * (C ** -0.5)
    tril = jnp.tril(jnp.ones((T, T), dtype=bool))
    wei = jnp.where(tril, wei, -jnp.inf)
    wei = jax.nn.softmax(wei, axis=-1)
    return wei @ v


if __name__ == "__main__":
    key = jax.random.PRNGKey(0)
    k_x, k_k, k_q, k_v = jax.random.split(key, 4)

    B, T, C, H = 2, BLOCK_SIZE, N_EMBD, HEAD_SIZE

    x = jax.random.normal(k_x, (B, T, C), dtype=jnp.float32)
    # PyTorch Linear weight layout: (out_features, in_features) = (H, C).
    bound = 1.0 / (C ** 0.5)
    w_key = jax.random.uniform(k_k, (H, C), jnp.float32, -bound, bound)
    w_query = jax.random.uniform(k_q, (H, C), jnp.float32, -bound, bound)
    w_value = jax.random.uniform(k_v, (H, C), jnp.float32, -bound, bound)

    # Fused + padded projection weight, built once (hoisted out of the call path).
    wqkv_pad = build_fused_qkv_weight(w_key, w_query, w_value)

    out = head_forward(x, wqkv_pad, head_size=H)
    out = jax.block_until_ready(out)

    ref = head_reference(x, w_key, w_query, w_value)
    assert out.shape == (B, T, H), out.shape
    assert jnp.allclose(out, ref, atol=1e-5, rtol=1e-5), (
        float(jnp.max(jnp.abs(out - ref)))
    )

    print("KERNEL_OK")
</pallas_src>

<mosaic_0001>
module attributes {stable_mosaic.version = 11 : i64} {
  func.func @head_kernel(%arg0: i32, %arg1: memref<1x16x32xf32, #tpu.memory_space<vmem>>, %arg2: memref<32x384xf32, #tpu.memory_space<vmem>>, %arg3: memref<1x16x128xf32, #tpu.memory_space<vmem>>) attributes {dimension_semantics = [#tpu.dimension_semantics<parallel>], iteration_bounds = array<i64: 2>, scalar_prefetch = 0 : i64, scratch_operands = 0 : i64, tpu.core_type = #tpu.core_type<tc>, window_params = [{transform_indices = @transform_0, window_bounds = array<i64: 1, 16, 32>}, {pipeline_mode = #tpu.pipeline_mode<synchronous>, transform_indices = @transform_1, window_bounds = array<i64: 32, 384>}, {transform_indices = @transform_2, window_bounds = array<i64: 1, 16, 128>}]} {
    %c0 = arith.constant 0 : index
    %c0_0 = arith.constant 0 : index
    %c0_1 = arith.constant 0 : index
    %0 = vector.load %arg1[%c0, %c0_0, %c0_1] : memref<1x16x32xf32, #tpu.memory_space<vmem>>, vector<1x16x32xf32>
    %1 = vector.shape_cast %0 : vector<1x16x32xf32> to vector<16x32xf32>
    %c0_2 = arith.constant 0 : index
    %c0_3 = arith.constant 0 : index
    %2 = vector.load %arg2[%c0_2, %c0_3] : memref<32x384xf32, #tpu.memory_space<vmem>>, vector<32x384xf32>
    %cst = arith.constant dense<0.000000e+00> : vector<16x384xf32>
    %3 = tpu.matmul %1, %2, %cst {dimension_numbers = #tpu.dot_dimension_numbers<[1], [0], [0], [1], [0, 0, 1, 1], [], []>} : vector<16x32xf32>, vector<32x384xf32>, vector<16x384xf32> -> vector<16x384xf32>
    %4 = vector.extract_strided_slice %3 {offsets = [0, 0], sizes = [16, 128], strides = [1, 1]} : vector<16x384xf32> to vector<16x128xf32>
    %5 = vector.extract_strided_slice %3 {offsets = [0, 128], sizes = [16, 128], strides = [1, 1]} : vector<16x384xf32> to vector<16x128xf32>
    %6 = vector.extract_strided_slice %3 {offsets = [0, 256], sizes = [16, 128], strides = [1, 1]} : vector<16x384xf32> to vector<16x128xf32>
    %cst_4 = arith.constant dense<0.000000e+00> : vector<16x16xf32>
    %7 = tpu.matmul %4, %5, %cst_4 {dimension_numbers = #tpu.dot_dimension_numbers<[1], [1], [0], [0], [0, 0, 1, 0], [], []>} : vector<16x128xf32>, vector<16x128xf32>, vector<16x16xf32> -> vector<16x16xf32>
    %cst_5 = arith.constant 0.176776692 : f32
    %8 = vector.broadcast %cst_5 : f32 to vector<16x16xf32>
    %9 = arith.mulf %7, %8 : vector<16x16xf32>
    %10 = tpu.iota {dimensions = array<i32: 0>} : vector<16x16xi32>
    %11 = tpu.iota {dimensions = array<i32: 1>} : vector<16x16xi32>
    %12 = arith.cmpi sle, %11, %10 : vector<16x16xi32>
    %cst_6 = arith.constant 0xFF800000 : f32
    %13 = vector.broadcast %cst_6 : f32 to vector<16x16xf32>
    %14 = arith.select %12, %9, %13 : vector<16x16xi1>, vector<16x16xf32>
    %cst_7 = arith.constant dense<0xFF800000> : vector<16xf32>
    %15 = vector.multi_reduction <maximumf>, %14, %cst_7 [1] : vector<16x16xf32> to vector<16xf32>
    %16 = vector.shape_cast %15 : vector<16xf32> to vector<16x1xf32>
    %17 = vector.broadcast %16 : vector<16x1xf32> to vector<16x16xf32>
    %18 = arith.subf %14, %17 : vector<16x16xf32>
    %19 = math.exp %18 : vector<16x16xf32>
    %cst_8 = arith.constant dense<0.000000e+00> : vector<16xf32>
    %20 = vector.multi_reduction <add>, %19, %cst_8 [1] : vector<16x16xf32> to vector<16xf32>
    %21 = vector.shape_cast %20 : vector<16xf32> to vector<16x1xf32>
    %22 = tpu.reciprocal %21 {approx = true} : vector<16x1xf32> -> vector<16x1xf32>
    %23 = arith.mulf %21, %22 : vector<16x1xf32>
    %cst_9 = arith.constant 2.000000e+00 : f32
    %24 = vector.broadcast %cst_9 : f32 to vector<16x1xf32>
    %25 = arith.subf %24, %23 : vector<16x1xf32>
    %26 = arith.mulf %22, %25 : vector<16x1xf32>
    %27 = vector.broadcast %26 : vector<16x1xf32> to vector<16x16xf32>
    %28 = arith.mulf %19, %27 : vector<16x16xf32>
    %cst_10 = arith.constant dense<0.000000e+00> : vector<16x128xf32>
    %29 = tpu.matmul %28, %6, %cst_10 {dimension_numbers = #tpu.dot_dimension_numbers<[1], [0], [0], [1], [0, 0, 1, 1], [], []>} : vector<16x16xf32>, vector<16x128xf32>, vector<16x128xf32> -> vector<16x128xf32>
    %c0_11 = arith.constant 0 : index
    %c0_12 = arith.constant 0 : index
    %c0_13 = arith.constant 0 : index
    %30 = vector.load %arg3[%c0_11, %c0_12, %c0_13] : memref<1x16x128xf32, #tpu.memory_space<vmem>>, vector<1x16x128xf32>
    %31 = vector.shape_cast %30 : vector<1x16x128xf32> to vector<16x128xf32>
    %32 = vector.shape_cast %29 : vector<16x128xf32> to vector<1x16x128xf32>
    tpu.vector_store %arg3[%c0_11, %c0_12, %c0_13], %32 {strides = array<i32>} : memref<1x16x128xf32, #tpu.memory_space<vmem>>, vector<1x16x128xf32>,
    return
  }
  func.func @transform_0(%arg0: i32) -> (i32, i32, i32) {
    %c0_i32 = arith.constant 0 : i32
    %c0_i32_0 = arith.constant 0 : i32
    %c0_i32_1 = arith.constant 0 : i32
    return %arg0, %c0_i32, %c0_i32_0 : i32, i32, i32
  }
  func.func @transform_1(%arg0: i32) -> (i32, i32) {
    %c0_i32 = arith.constant 0 : i32
    %c0_i32_0 = arith.constant 0 : i32
    %c0_i32_1 = arith.constant 0 : i32
    return %c0_i32, %c0_i32_0 : i32, i32
  }
  func.func @transform_2(%arg0: i32) -> (i32, i32, i32) {
    %c0_i32 = arith.constant 0 : i32
    %c0_i32_0 = arith.constant 0 : i32
    %c0_i32_1 = arith.constant 0 : i32
    return %arg0, %c0_i32, %c0_i32_0 : i32, i32, i32
  }
}

</mosaic_0001>

<llo_original>
// kernel: head_forward.1
$region0: #{head_forward.1}
  #allocation0 [shape = 'u32[]', space=smem, size = 0x4, offset = 0x4, fixed_abs, tag = 'smem constant byte address 0x4 - core index']
  #allocation1 [shape = 'u32[72,128]{1,0:T(1,128)}', space=vmem, size = 0x9000, scoped, tag = 'internal scratch']
  %s0 = inlined_call_operand.hbm [shape: f32[2,16,32], index: 0, kind: input, shape index: {}]
  %s1 = inlined_call_operand.hbm [shape: f32[32,384], index: 1, kind: input, shape index: {}]
  %s2 = inlined_call_operand.hbm [shape: f32[2,16,128], index: 2, kind: output, shape index: {}]
  %s3 = sld [smem:[#allocation0]]
  $region49: #{head_forward.1} parent=0
    _
  %s5 = ssub.s32 1, %s3
  %s6 = scalar_select 0, %s5, %s3
  $region1: #{head_forward.1} parent=0
    #allocation2 [shape = 'u8[16384]{0}', space=vmem, size = 0x4000, scoped, tag = 'input window, operand 0']
    #allocation3 [shape = 's32[2]{0}', space=sflag, size = 0x8, scoped, tag = 'scoped memory for head_forward.1']
    #allocation4 [shape = 's32[2]{0}', space=sflag, size = 0x8, scoped, tag = 'scoped memory for head_forward.1']
    #allocation5 [shape = 'u8[49152]{0}', space=vmem, size = 0xc000, scoped, tag = 'input window, operand 1, single buffered']
    #allocation6 [shape = 's32[1]{0}', space=sflag, size = 0x4, scoped, tag = 'scoped memory for head_forward.1']
    #allocation7 [shape = 'u8[16384]{0}', space=vmem, size = 0x4000, scoped, tag = 'output window, operand 0']
    %7 = vsyncpa [#allocation3], 0
    %s8 = scalar_lea.sflag [#allocation3], 1
    %9 = vsyncpa %s8, 0
    %10 = vsyncpa [#allocation6], 0
    %11 = vsyncpa [#allocation4], 0
    %s12 = scalar_lea.sflag [#allocation4], 1
    %13 = vsyncpa %s12, 0
    loop: start=0, step=1, limit=4
    $region2: #{head_forward.1} parent=1 // loop_pre_header
      _
    $region3: #{head_forward.1} parent=1 // loop_header
      %s15 = sphi 0, %s19
      %p16 = scmp.ge.s32.totalorder %s15, 4
      %s25 = sphi 0, %s27
      %s28 = sphi 0, %s25
      %s29 = sphi 0, %s28
      %s45 = sphi 0, %s29
      %s49 = sphi 0, %s49
      %s51 = sphi 0, %s49
      %s52 = sphi 0, %s51
      %s66 = sphi 0, %s52
      %s72 = sphi 0, %s74
      %s75 = sphi 0, %s72
      %s76 = sphi 0, %s75
      %s92 = sphi 0, %s76
    $region4: #{head_forward.1} parent=1 // loop_header_branch
      %18 = sbr.rel (%p16) target = $region8
    $region5: #{head_forward.1} parent=1 // loop_body
      %s20 = ssub.s32 %s15, 1
      %s21 = ssub.s32 %s15, 2
      %s22 = sadd.s32 %s15, 1
      %s23 = ssub.s32 %s15, %s22
      %p24 = scmp.eq.s32.totalorder %s23, 0
      %s26 = sadd.s32 %s25, 1
      %s27 = scalar_select %p24, %s25, %s26
      %p30 = pneg %p24
      %p31 = scmp.eq.s32.totalorder %s15, 1
      %p32 = por %p30, %p31
      %p33 = scmp.ne.s32.totalorder %s25, %s28
      %p34 = scmp.eq.s32.totalorder %s15, 0
      %p35 = por %p33, %p34
      %p36 = scmp.ne.s32.totalorder %s25, %s28
      %p37 = scmp.eq.s32.totalorder %s20, 1
      %p38 = por %p36, %p37
      %p39 = scmp.ne.s32.totalorder %s28, %s29
      %p40 = scmp.eq.s32.totalorder %s20, 0
      %p41 = por %p39, %p40
      %p42 = scmp.ne.s32.totalorder %s28, %s29
      %p43 = scmp.eq.s32.totalorder %s21, 1
      %p44 = por %p42, %p43
      %p46 = scmp.ne.s32.totalorder %s29, %s45
      %p47 = scmp.eq.s32.totalorder %s21, 0
      %p48 = por %p46, %p47
      %s50 = sadd.s32 %s49, 1
      %p53 = scmp.eq.s32.totalorder %s15, 1
      %p54 = scmp.ne.s32.totalorder %s49, %s51
      %p55 = scmp.eq.s32.totalorder %s15, 0
      %p56 = por %p54, %p55
      %p57 = scmp.ne.s32.totalorder %s49, %s51
      %p58 = scmp.eq.s32.totalorder %s20, 1
      %p59 = por %p57, %p58
      %p60 = scmp.ne.s32.totalorder %s51, %s52
      %p61 = scmp.eq.s32.totalorder %s20, 0
      %p62 = por %p60, %p61
      %p63 = scmp.ne.s32.totalorder %s51, %s52
      %p64 = scmp.eq.s32.totalorder %s21, 1
      %p65 = por %p63, %p64
      %p67 = scmp.ne.s32.totalorder %s52, %s66
      %p68 = scmp.eq.s32.totalorder %s21, 0
      %p69 = por %p67, %p68
      %s70 = ssub.s32 %s15, %s22
      %p71 = scmp.eq.s32.totalorder %s70, 0
      %s73 = sadd.s32 %s72, 1
      %s74 = scalar_select %p71, %s72, %s73
      %p77 = pneg %p71
      %p78 = scmp.eq.s32.totalorder %s15, 1
      %p79 = por %p77, %p78
      %p80 = scmp.ne.s32.totalorder %s72, %s75
      %p81 = scmp.eq.s32.totalorder %s15, 0
      %p82 = por %p80, %p81
      %p83 = scmp.ne.s32.totalorder %s72, %s75
      %p84 = scmp.eq.s32.totalorder %s20, 1
      %p85 = por %p83, %p84
      %p86 = scmp.ne.s32.totalorder %s75, %s76
      %p87 = scmp.eq.s32.totalorder %s20, 0
      %p88 = por %p86, %p87
      %p89 = scmp.ne.s32.totalorder %s75, %s76
      %p90 = scmp.eq.s32.totalorder %s21, 1
      %p91 = por %p89, %p90
      %p93 = scmp.ne.s32.totalorder %s76, %s92
      %p94 = scmp.eq.s32.totalorder %s21, 0
      %p95 = por %p93, %p94
      %p96 = scmp.le.s32.totalorder 1, %s15
      %p97 = scmp.lt.s32.totalorder %s15, 3
      %p98 = pnand %p96, %p97
      %p99 = pneg %p98
      // Predicated region
      $region9: #{head_forward.1} parent=5 // pred_check
        _
      $region10: #{head_forward.1} parent=5 // pred_check_branch
        %101 = sbr.rel (%p98) target = $region12
      $region11: #{head_forward.1} parent=5 // pred_region
        %s102 = ssub.s32 %s15, 1
        // Predicated region
        $region13: #{head_forward.1} parent=11 // pred_check
          %p103 = pneg %p62
        $region14: #{head_forward.1} parent=11 // pred_check_branch
          %105 = sbr.rel (%p103) target = $region16
        $region15: #{head_forward.1} parent=11 // pred_region
          %107 = vsyncadd [#allocation6], 0
          %s108 = sshll.u32 %s1, 4
          %s109 = int_to_ptr.hbm [resolvable:$true] %s108
          %s110 = sshll.u32 [#allocation5], 4
          %s111 = int_to_ptr.vmem [resolvable:$true] %s110
          %116 = dma.hbm_to_vmem [thread:$0]  %s109, 1536, %s111, [#allocation6], 384, 384, 24
        $region16: #{head_forward.1} parent=11 // pred_fallthru
          _
      $region12: #{head_forward.1} parent=5 // pred_fallthru
        _
      %p117 = scmp.lt.s32.totalorder %s15, 2
      // Predicated region
      $region17: #{head_forward.1} parent=5 // pred_check
        %p118 = pneg %p117
      $region18: #{head_forward.1} parent=5 // pred_check_branch
        %120 = sbr.rel (%p118) target = $region20
      $region19: #{head_forward.1} parent=5 // pred_region
        // Predicated region
        $region21: #{head_forward.1} parent=19 // pred_check
          %p121 = pneg %p35
        $region22: #{head_forward.1} parent=19 // pred_check_branch
          %123 = sbr.rel (%p121) target = $region24
        $region23: #{head_forward.1} parent=19 // pred_region
          %s124 = sand.u32 %s25, 1
          %s125 = scalar_lea.sflag [#allocation3], %s124
          %s126 = sand.u32 %s25, 1
          %s127 = smul.addr %s126, 16
          %s128 = scalar_lea.vmem [#allocation2], %s127
          %130 = vsyncadd %s125, 0
          %s131 = smul.addr %s15, 2
          %s132 = smul.addr %s131, 8
          %s133 = scalar_lea.hbm %s0, %s132
          %s134 = sshll.u32 %s133, 4
          %s135 = int_to_ptr.hbm [resolvable:$true] %s134
          %s136 = sshll.u32 %s128, 4
          %s137 = int_to_ptr.vmem [resolvable:$true] %s136
          %142 = dma.hbm_to_vmem [thread:$0]  %s135, 256, %s137, %s125, 128, 128, 8
        $region24: #{head_forward.1} parent=19 // pred_fallthru
          _
      $region20: #{head_forward.1} parent=5 // pred_fallthru
        _
      %p143 = scmp.le.s32.totalorder 1, %s15
      %p144 = scmp.lt.s32.totalorder %s15, 3
      %p145 = pnand %p143, %p144
      %p146 = pneg %p145
      // Predicated region
      $region25: #{head_forward.1} parent=5 // pred_check
        _
      $region26: #{head_forward.1} parent=5 // pred_check_branch
        %148 = sbr.rel (%p145) target = $region28
      $region27: #{head_forward.1} parent=5 // pred_region
        %s149 = ssub.s32 %s15, 1
        %s150 = sand.u32 %s28, 1
        %s151 = scalar_lea.sflag [#allocation3], %s150
        %s152 = sand.u32 %s28, 1
        %s153 = smul.addr %s152, 16
        %s154 = scalar_lea.vmem [#allocation2], %s153
        // Predicated region
        $region29: #{head_forward.1} parent=27 // pred_check
          %p155 = pneg %p41
        $region30: #{head_forward.1} parent=27 // pred_check_branch
          %157 = sbr.rel (%p155) target = $region32
        $region31: #{head_forward.1} parent=27 // pred_region
          %159 = dma.done %s151, 256
        $region32: #{head_forward.1} parent=27 // pred_fallthru
          _
        // Predicated region
        $region33: #{head_forward.1} parent=27 // pred_check
          %p160 = pneg %p62
        $region34: #{head_forward.1} parent=27 // pred_check_branch
          %162 = sbr.rel (%p160) target = $region36
        $region35: #{head_forward.1} parent=27 // pred_region
          %164 = dma.done [#allocation6], 1536
        $region36: #{head_forward.1} parent=27 // pred_fallthru
          _
        %s165 = sand.u32 %s28, 1
        %s166 = scalar_lea.sflag [#allocation3], %s165
        %s167 = sand.u32 %s28, 1
        %s168 = smul.addr %s167, 16
        %s169 = scalar_lea.vmem [#allocation2], %s168
        %p170 = pneg %p41
        %p171 = pneg %p38
        %p172 = pneg %p62
        %p173 = pneg %p59
        %p174 = pneg %p88
        %p175 = pneg %p85
        %s176 = sand.u32 %s75, 1
        %s177 = scalar_lea.sflag [#allocation4], %s176
        %s178 = sand.u32 %s75, 1
        %s179 = smul.addr %s178, 16
        %s180 = scalar_lea.vmem [#allocation7], %s179
        %v181 = vld [vmem:[%s154] sm:$0xff]
        %v182 = vld [vmem:[%s154 + $0x8] sm:$0xff]
        %v183 = vld [vmem:[#allocation5] sm:$0xff]
        %v184 = vld [vmem:[#allocation5 + $0x8] sm:$0xff]
        %v185 = vld [vmem:[#allocation5 + $0x10] sm:$0xff]
        %v186 = vld [vmem:[#allocation5 + $0x18] sm:$0xff]
        %v187 = vld [vmem:[#allocation5 + $0x20] sm:$0xff]
        %v188 = vld [vmem:[#allocation5 + $0x28] sm:$0xff]
        %v189 = vld [vmem:[#allocation5 + $0x30] sm:$0xff]
        %v190 = vld [vmem:[#allocation5 + $0x38] sm:$0xff]
        %v191 = vld [vmem:[#allocation5 + $0x40] sm:$0xff]
        %v192 = vld [vmem:[#allocation5 + $0x48] sm:$0xff]
        %v193 = vld [vmem:[#allocation5 + $0x50] sm:$0xff]
        %v194 = vld [vmem:[#allocation5 + $0x58] sm:$0xff]
        %vm195 = vcmask 261120
        %v197 = vsel %vm195, %v181, 0
        %v200 = vsel %vm195, %v182, 0
        %202 = vmatpush.msra.mxu0 0.0
        %203 = vmatpush.msra.mxu0 0.0
        %204 = vmatpush.msra.mxu0 0.0
        %205 = vmatpush.msra.mxu0 0.0
        %206 = vmatpush.msra.mxu0 0.0
        %207 = vmatpush.msra.mxu0 0.0
        %208 = vmatpush.msra.mxu0 0.0
        %209 = vmatpush.msra.mxu0 0.0
        %210 = vmatpush.msra.mxu0 0.0
        %211 = vmatpush.msra.mxu0 0.0
        %212 = vmatpush.msra.mxu0 0.0
        %213 = vmatpush.msra.mxu0 0.0
        %214 = vmatpush.msra.mxu0 %v192
        %215 = vmatpush.msra.mxu0 %v189
        %216 = vmatpush.msra.mxu0 %v186
        %217 = vmatpush.msra.mxu0 %v183
        %218 = vmatmul.f32.gmra.mxu0 %v197
        %v219 = vpop.f32.mrf.mxu0
        %v220 = vadd.f32 0.0, %v219
        %221 = vmatmul.f32.gmra.mxu0 %v200
        %v222 = vpop.f32.mrf.mxu0
        %v223 = vadd.f32 0.0, %v222
        %224 = vdwg.mxu0
        %225 = vmatpush.msra.mxu0 0.0
        %226 = vmatpush.msra.mxu0 0.0
        %227 = vmatpush.msra.mxu0 0.0
        %228 = vmatpush.msra.mxu0 0.0
        %229 = vmatpush.msra.mxu0 0.0
        %230 = vmatpush.msra.mxu0 0.0
        %231 = vmatpush.msra.mxu0 0.0
        %232 = vmatpush.msra.mxu0 0.0
        %233 = vmatpush.msra.mxu0 0.0
        %234 = vmatpush.msra.mxu0 0.0
        %235 = vmatpush.msra.mxu0 0.0
        %236 = vmatpush.msra.mxu0 0.0
        %237 = vmatpush.msra.mxu0 %v193
        %238 = vmatpush.msra.mxu0 %v190
        %239 = vmatpush.msra.mxu0 %v187
        %240 = vmatpush.msra.mxu0 %v184
        %241 = vmatmul.f32.gmra.mxu0 %v197
        %v242 = vpop.f32.mrf.mxu0
        %v243 = vadd.f32 0.0, %v242
        %244 = vmatmul.f32.gmra.mxu0 %v200
        %v245 = vpop.f32.mrf.mxu0
        %v246 = vadd.f32 0.0, %v245
        %247 = vdwg.mxu0
        %248 = vmatpush.msra.mxu0 0.0
        %249 = vmatpush.msra.mxu0 0.0
        %250 = vmatpush.msra.mxu0 0.0
        %251 = vmatpush.msra.mxu0 0.0
        %252 = vmatpush.msra.mxu0 0.0
        %253 = vmatpush.msra.mxu0 0.0
        %254 = vmatpush.msra.mxu0 0.0
        %255 = vmatpush.msra.mxu0 0.0
        %256 = vmatpush.msra.mxu0 0.0
        %257 = vmatpush.msra.mxu0 0.0
        %258 = vmatpush.msra.mxu0 0.0
        %259 = vmatpush.msra.mxu0 0.0
        %260 = vmatpush.msra.mxu0 %v194
        %261 = vmatpush.msra.mxu0 %v191
        %262 = vmatpush.msra.mxu0 %v188
        %263 = vmatpush.msra.mxu0 %v185
        %264 = vmatmul.f32.gmra.mxu0 %v197
        %v265 = vpop.f32.mrf.mxu0
        %v266 = vadd.f32 0.0, %v265
        %267 = vmatmul.f32.gmra.mxu0 %v200
        %v268 = vpop.f32.mrf.mxu0
        %v269 = vadd.f32 0.0, %v268
        %270 = vdwg.mxu0
        %271 = vmatpush.xpose.msra.mxu0 0.0
        %272 = vmatpush.xpose.msra.mxu0 0.0
        %273 = vmatpush.xpose.msra.mxu0 0.0
        %274 = vmatpush.xpose.msra.mxu0 0.0
        %275 = vmatpush.xpose.msra.mxu0 0.0
        %276 = vmatpush.xpose.msra.mxu0 0.0
        %277 = vmatpush.xpose.msra.mxu0 0.0
        %278 = vmatpush.xpose.msra.mxu0 0.0
        %279 = vmatpush.xpose.msra.mxu0 0.0
        %280 = vmatpush.xpose.msra.mxu0 0.0
        %281 = vmatpush.xpose.msra.mxu0 0.0
        %282 = vmatpush.xpose.msra.mxu0 0.0
        %283 = vmatpush.xpose.msra.mxu0 0.0
        %284 = vmatpush.xpose.msra.mxu0 0.0
        %285 = vmatpush.xpose.msra.mxu0 %v246
        %286 = vmatpush.xpose.msra.mxu0 %v243
        %287 = vmatmul.f32.gmra.mxu0 %v220
        %v288 = vpop.f32.mrf.mxu0
        %v289 = vadd.f32 0.0, %v288
        %290 = vmatmul.f32.gmra.mxu0 %v223
        %v291 = vpop.f32.mrf.mxu0
        %v292 = vadd.f32 0.0, %v291
        %293 = vdwg.mxu0
        %v294 = vmul.f32 %v289, 0.17677669
        %v295 = vmul.f32 %v292, 0.17677669
        %v296 = vlaneseq
        %v297 = vshrl.u32 %v296, 7
        %v298 = vadd.s32 %v297, 8
        %v299 = vlaneseq
        %v300 = vand.u32 %v299, 127
        %vm301 = vcmp.le.s32.totalorder %v300, %v297
        %vm302 = vcmp.le.s32.totalorder %v300, %v298
        %v303 = vsel %vm301, %v294, -inf
        %v304 = vsel %vm302, %v295, -inf
        %vm305 = vcmask 130048
        %v306 = vsel %vm305, %v303, -inf
        %307 = vmax.xlane.f32.xlu0 %v306
        %v308 = vpop.xlane.xlu0 %307
        %v309 = vsel %vm305, %v304, -inf
        %310 = vmax.xlane.f32.xlu0 %v309
        %v311 = vpop.xlane.xlu0 %310
        %v312 = vsub.f32 %v303, %v308
        %v313 = vsub.f32 %v304, %v311
        %v314 = vmul.f32 %v312, 1.442695
        %v315 = vpow.pop %v314
        %v316 = vmul.f32 %v313, 1.442695
        %v317 = vpow.pop %v316
        %v318 = vsel %vm305, %v315, 0.0
        %319 = vadd.xlane.f32.xlu0 %v318
        %v320 = vpop.xlane.xlu0 %319
        %v321 = vsel %vm305, %v317, 0.0
        %322 = vadd.xlane.f32.xlu0 %v321
        %v323 = vpop.xlane.xlu0 %322
        %v324 = vrcp.pop %v320
        %v325 = vrcp.pop %v323
        %v326 = vmul.f32 %v320, %v324
        %v327 = vmul.f32 %v323, %v325
        %v328 = vsub.f32 2.0, %v326
        %v329 = vsub.f32 2.0, %v327
        %v330 = vmul.f32 %v324, %v328
        %v331 = vmul.f32 %v325, %v329
        %v332 = vmul.f32 %v315, %v330
        %v333 = vmul.f32 %v317, %v331
        %v335 = vsel %vm305, %v332, 0
        %v338 = vsel %vm305, %v333, 0
        %340 = vmatpush.msra.mxu0 0.0
        %341 = vmatpush.msra.mxu0 0.0
        %342 = vmatpush.msra.mxu0 0.0
        %343 = vmatpush.msra.mxu0 0.0
        %344 = vmatpush.msra.mxu0 0.0
        %345 = vmatpush.msra.mxu0 0.0
        %346 = vmatpush.msra.mxu0 0.0
        %347 = vmatpush.msra.mxu0 0.0
        %348 = vmatpush.msra.mxu0 0.0
        %349 = vmatpush.msra.mxu0 0.0
        %350 = vmatpush.msra.mxu0 0.0
        %351 = vmatpush.msra.mxu0 0.0
        %352 = vmatpush.msra.mxu0 0.0
        %353 = vmatpush.msra.mxu0 0.0
        %354 = vmatpush.msra.mxu0 %v269
        %355 = vmatpush.msra.mxu0 %v266
        %356 = vmatmul.f32.gmra.mxu0 %v335
        %v357 = vpop.f32.mrf.mxu0
        %v358 = vadd.f32 0.0, %v357
        %359 = vmatmul.f32.gmra.mxu0 %v338
        %v360 = vpop.f32.mrf.mxu0
        %v361 = vadd.f32 0.0, %v360
        %362 = vdwg.mxu0
        %363 = vst [vmem:[%s180] sm:$0xff] %v358
        %364 = vst [vmem:[%s180 + $0x8] sm:$0xff] %v361
        %s365 = sand.u32 %s75, 1
        %s366 = scalar_lea.sflag [#allocation4], %s365
        %s367 = sand.u32 %s75, 1
        %s368 = smul.addr %s367, 16
        %s369 = scalar_lea.vmem [#allocation7], %s368
        // Predicated region
        $region37: #{head_forward.1} parent=27 // pred_check
          %p370 = pneg %p85
        $region38: #{head_forward.1} parent=27 // pred_check_branch
          %372 = sbr.rel (%p370) target = $region40
        $region39: #{head_forward.1} parent=27 // pred_region
          %374 = vsyncadd %s366, 0
          %s375 = smul.addr %s20, 2
          %s376 = smul.addr %s375, 8
          %s377 = scalar_lea.hbm %s2, %s376
          %s378 = sshll.u32 %s369, 4
          %s379 = int_to_ptr.vmem [resolvable:$true] %s378
          %s380 = sshll.u32 %s377, 4
          %s381 = int_to_ptr.hbm [resolvable:$true] %s380
          %386 = dma.vmem_to_hbm [thread:$0]  %s379, 256, %s381, %s366, 128, 128, 8
        $region40: #{head_forward.1} parent=27 // pred_fallthru
          _
      $region28: #{head_forward.1} parent=5 // pred_fallthru
        _
      %p387 = scmp.le.s32.totalorder 2, %s15
      // Predicated region
      $region41: #{head_forward.1} parent=5 // pred_check
        %p388 = pneg %p387
      $region42: #{head_forward.1} parent=5 // pred_check_branch
        %390 = sbr.rel (%p388) target = $region44
      $region43: #{head_forward.1} parent=5 // pred_region
        %s391 = ssub.s32 %s15, 2
        // Predicated region
        $region45: #{head_forward.1} parent=43 // pred_check
          %p392 = pneg %p91
        $region46: #{head_forward.1} parent=43 // pred_check_branch
          %394 = sbr.rel (%p392) target = $region48
        $region47: #{head_forward.1} parent=43 // pred_region
          %s395 = sand.u32 %s76, 1
          %s396 = scalar_lea.sflag [#allocation4], %s395
          %s397 = sand.u32 %s76, 1
          %s398 = smul.addr %s397, 16
          %s399 = scalar_lea.vmem [#allocation7], %s398
          %401 = dma.done %s396, 256
        $region48: #{head_forward.1} parent=43 // pred_fallthru
          _
      $region44: #{head_forward.1} parent=5 // pred_fallthru
        _
    $region6: #{head_forward.1} parent=1 // loop_footer
      %s19 = sadd.s32 1, %s15
    $region7: #{head_forward.1} parent=1 // loop_footer_branch
      %14 = sbr.rel target = $region3
    $region8: #{head_forward.1} parent=1 // loop_exit
      _
    %402 = vsyncpa [#allocation3], 1
    %s403 = scalar_lea.sflag [#allocation3], 1
    %404 = vsyncpa %s403, 1
    %405 = vsyncpa [#allocation6], 1
    %406 = vsyncpa [#allocation4], 1
    %s407 = scalar_lea.sflag [#allocation4], 1
    %408 = vsyncpa %s407, 1

</llo_original>
